<compile_context>
chip_gen: v7x
topology: tpu7x:2x2x1
jax: 0.10.0
libtpu: 0.0.40
codegen_flags: <defaults>
</compile_context>

<pallas_src>
import functools

import jax
import jax.numpy as jnp
from jax.experimental import pallas as pl
from jax.experimental.pallas import tpu as pltpu

BN_EPS = 1e-5


def _round_up(v, m):
    return ((v + m - 1) // m) * m


def _fused_kernel(x_hbm, w_ref, p_ref, o_ref, in_sem, *, n_valid):
    """One grid step == one (Linear -> Softplus -> BatchNorm) layer.

    x_hbm : (N_pad, F_pad)     padded input, left in HBM (pl.ANY)
    w_ref : (1, F_pad, F_pad)  pre-transposed (in, out) weight, bf16, zero-pad
    p_ref : (1, 3, F_pad)      [bias; gamma; beta], f32
    o_ref : (N_pad, F_pad)     activation tile; VMEM-resident across layers
    in_sem: scalar DMA semaphore for the layer-0 input copy
    """
    layer = pl.program_id(0)

    # Seed the resident activation tile with the input on the first layer
    # via a direct HBM->VMEM DMA (no extra VMEM buffer, no VPU copy).
    @pl.when(layer == 0)
    def _():
        cp = pltpu.make_async_copy(x_hbm, o_ref, in_sem)
        cp.start()
        cp.wait()

    a = o_ref[...]                          # previous layer's activations, f32
    w = w_ref[0]                            # (F_pad, F_pad) bf16, (in, out)
    p = p_ref[0]                            # (3, F_pad) f32
    b = p[0:1, :]
    g = p[1:2, :]
    be = p[2:3, :]

    # Linear on the native bf16 MXU path; accumulate in f32.
    h = jnp.dot(a.astype(jnp.bfloat16), w,
                preferred_element_type=jnp.float32) + b

    # Softplus (beta=1): single numerically-stable branch.  For h > 20 the
    # log1p term is below 1 f32 ulp of h, so the PyTorch threshold select is
    # redundant after rounding.
    s = jnp.log1p(jnp.exp(-jnp.abs(h))) + jnp.maximum(h, 0.0)

    # BatchNorm1d, training mode: biased batch statistics over valid rows.
    # One-pass form: two independent sublane reductions, var clamped at 0.
    n_pad = s.shape[0]
    inv_n = jnp.float32(1.0 / n_valid)
    if n_valid == n_pad:
        s_m = s
    else:
        rows = jax.lax.broadcasted_iota(jnp.int32, s.shape, 0)
        s_m = jnp.where(rows < n_valid, s, 0.0)
    mean = jnp.sum(s_m, axis=0, keepdims=True) * inv_n
    var = jnp.maximum(
        jnp.sum(s_m * s_m, axis=0, keepdims=True) * inv_n - mean * mean, 0.0)

    # Dropout(p=0) == identity.
    o_ref[...] = g * (s - mean) * jax.lax.rsqrt(var + BN_EPS) + be


@functools.partial(jax.jit,
                   static_argnames=("n_valid", "vmem_limit", "use_triple"))
def _fused_forward(x_pad, w_stack, p_stack, n_valid, vmem_limit, use_triple):
    n_pad, f_pad = x_pad.shape
    depth = w_stack.shape[0]

    kernel = functools.partial(_fused_kernel, n_valid=n_valid)

    w_spec_kwargs = {}
    if use_triple:
        # Weight-DMA-bound regime (small batch, deep stack): 3-deep buffering.
        w_spec_kwargs["pipeline_mode"] = pl.Buffered(3)
    w_spec = pl.BlockSpec((1, f_pad, f_pad), lambda l: (l, 0, 0),
                          **w_spec_kwargs)

    cost = pl.CostEstimate(
        flops=2 * depth * n_pad * f_pad * f_pad,
        transcendentals=2 * depth * n_pad * f_pad,
        bytes_accessed=int(x_pad.size * 4 + w_stack.size * 2
                           + p_stack.size * 4 + n_pad * f_pad * 4),
    )

    return pl.pallas_call(
        kernel,
        out_shape=jax.ShapeDtypeStruct((n_pad, f_pad), jnp.float32),
        grid=(depth,),
        in_specs=[
            pl.BlockSpec(memory_space=pl.ANY),                 # x stays in HBM
            w_spec,                                            # bf16 weights
            pl.BlockSpec((1, 3, f_pad), lambda l: (l, 0, 0)),  # b/gamma/beta
        ],
        out_specs=pl.BlockSpec((n_pad, f_pad), lambda l: (0, 0)),
        scratch_shapes=[pltpu.SemaphoreType.DMA(())],
        compiler_params=pltpu.CompilerParams(
            # depth axis is a sequential layer chain -> arbitrary.
            dimension_semantics=("arbitrary",),
            vmem_limit_bytes=vmem_limit,
        ),
        cost_estimate=cost,
    )(x_pad, w_stack, p_stack)


def _pack_params(params, f_pad):
    """Stack per-layer params: bf16 pre-transposed weights + packed vectors."""
    w_l, p_l = [], []
    for (w, b, g, be) in params:
        f_out, f_in = w.shape
        wt = jnp.zeros((f_pad, f_pad), jnp.float32).at[:f_in, :f_out].set(w.T)
        p = jnp.zeros((3, f_pad), jnp.float32)
        p = p.at[0, :f_out].set(b)
        p = p.at[1, :].set(1.0)            # gamma padding (harmless)
        p = p.at[1, :f_out].set(g)
        p = p.at[2, :f_out].set(be)
        w_l.append(wt.astype(jnp.bfloat16))
        p_l.append(p)
    return jnp.stack(w_l), jnp.stack(p_l)


def nonlinear_transform(x, params):
    """Forward pass of _NonlinearTransform (training mode, dropout p=0)."""
    n, f_in = x.shape
    f_out = params[0][0].shape[0]
    depth = len(params)
    f_pad = _round_up(max(f_in, f_out, 1), 128)   # lane-dense features
    n_pad = _round_up(max(n, 1), 16)              # bf16-friendly sublanes

    w_s, p_s = _pack_params(params, f_pad)
    x_pad = jnp.zeros((n_pad, f_pad), jnp.float32).at[:n, :f_in].set(
        x.astype(jnp.float32))

    # VMEM budget derived from the actual chip (valid on 64 MiB v7x too).
    try:
        vmem_cap = int(pltpu.get_tpu_info().vmem_capacity_bytes)
    except Exception:
        vmem_cap = 64 * 1024 * 1024               # conservative per-TC floor
    act_bytes = n_pad * f_pad * 4                 # resident activation tile
    w_bytes = f_pad * f_pad * 2                   # bf16 weight block
    p_bytes = 3 * f_pad * 4
    needed = act_bytes + 2 * (w_bytes + p_bytes)  # act + double-buffered params
    vmem_limit = int(min(max(2 * needed, 8 * 1024 * 1024),
                         (vmem_cap * 7) // 8))

    use_triple = bool(
        depth >= 3 and n_pad <= 256
        and 2 * (act_bytes + 3 * (w_bytes + p_bytes)) < vmem_limit)

    y_pad = _fused_forward(x_pad, w_s, p_s, n, vmem_limit, use_triple)
    return y_pad[:n, :f_out]


def init_params(key, in_features, out_features, depth):
    """Deterministic synthetic parameters, PyTorch-like shapes/init."""
    params = []
    fin = in_features
    for _ in range(depth):
        key, kw, kb = jax.random.split(key, 3)
        bound = 1.0 / jnp.sqrt(fin)
        w = jax.random.uniform(kw, (out_features, fin), jnp.float32, -bound, bound)
        b = jax.random.uniform(kb, (out_features,), jnp.float32, -bound, bound)
        gamma = jnp.ones((out_features,), jnp.float32)   # BN weight init
        beta = jnp.zeros((out_features,), jnp.float32)   # BN bias init
        params.append((w, b, gamma, beta))
        fin = out_features
    return params


def _reference(x, params):
    """Pure-JAX reference of the PyTorch forward (training-mode BN, p=0)."""
    y = x
    for (w, b, g, be) in params:
        h = jnp.dot(y, w.T, precision=jax.lax.Precision.HIGHEST) + b
        s = jnp.where(h > 20.0, h,
                      jnp.log1p(jnp.exp(jnp.minimum(h, 20.0))))
        mean = jnp.mean(s, axis=0, keepdims=True)
        var = jnp.mean((s - mean) ** 2, axis=0, keepdims=True)
        y = g * (s - mean) * jax.lax.rsqrt(var + BN_EPS) + be
    return y


if __name__ == "__main__":
    key = jax.random.PRNGKey(0)
    k_x, k_p = jax.random.split(key)

    batch = 8
    in_features = 32
    out_features = 32
    depth = 2

    x = jax.random.normal(k_x, (batch, in_features), jnp.float32)
    params = init_params(k_p, in_features, out_features, depth)

    y = nonlinear_transform(x, params)
    jax.block_until_ready(y)

    assert y.shape == (batch, out_features)
    assert bool(jnp.all(jnp.isfinite(y)))

    y_ref = _reference(x, params)
    err = float(jnp.max(jnp.abs(y - y_ref)))
    assert jnp.allclose(y, y_ref, atol=2e-2, rtol=2e-2), err

    print("KERNEL_OK")
</pallas_src>

<mosaic_0001>
module attributes {stable_mosaic.version = 11 : i64} {
  func.func @_fused_kernel(%arg0: i32, %arg1: memref<16x128xf32, #tpu.memory_space<any>>, %arg2: memref<1x128x128xbf16, #tpu.memory_space<vmem>>, %arg3: memref<1x3x128xf32, #tpu.memory_space<vmem>>, %arg4: memref<16x128xf32, #tpu.memory_space<vmem>>, %arg5: memref<!tpu.dma_semaphore, #tpu.memory_space<semaphore_mem>>) attributes {dimension_semantics = [#tpu.dimension_semantics<arbitrary>], iteration_bounds = array<i64: 2>, scalar_prefetch = 0 : i64, scratch_operands = 1 : i64, tpu.core_type = #tpu.core_type<tc>, window_params = [{}, {transform_indices = @transform_1, window_bounds = array<i64: 1, 128, 128>}, {transform_indices = @transform_2, window_bounds = array<i64: 1, 3, 128>}, {pipeline_mode = #tpu.pipeline_mode<synchronous>, transform_indices = @transform_3, window_bounds = array<i64: 16, 128>}]} {
    %c0_i32 = arith.constant 0 : i32
    %0 = arith.cmpi eq, %arg0, %c0_i32 : i32
    %1 = arith.extui %0 : i1 to i32
    %c0_i32_0 = arith.constant 0 : i32
    %2 = arith.cmpi ne, %1, %c0_i32_0 : i32
    scf.if %2 {
      tpu.enqueue_dma source(%arg1 : memref<16x128xf32, #tpu.memory_space<any>>) target(%arg4 : memref<16x128xf32, #tpu.memory_space<vmem>>) target_semaphore(%arg5 : memref<!tpu.dma_semaphore, #tpu.memory_space<semaphore_mem>>)
      tpu.wait_dma2 semaphore(%arg5 : memref<!tpu.dma_semaphore, #tpu.memory_space<semaphore_mem>>) src(%arg1 : memref<16x128xf32, #tpu.memory_space<any>>) dst(%arg4 : memref<16x128xf32, #tpu.memory_space<vmem>>)
    } else {
    }
    %c0 = arith.constant 0 : index
    %c0_1 = arith.constant 0 : index
    %3 = vector.load %arg4[%c0, %c0_1] : memref<16x128xf32, #tpu.memory_space<vmem>>, vector<16x128xf32>
    %c0_2 = arith.constant 0 : index
    %c0_3 = arith.constant 0 : index
    %c0_4 = arith.constant 0 : index
    %4 = vector.load %arg2[%c0_2, %c0_3, %c0_4] : memref<1x128x128xbf16, #tpu.memory_space<vmem>>, vector<1x128x128xbf16>
    %5 = vector.shape_cast %4 : vector<1x128x128xbf16> to vector<128x128xbf16>
    %c0_5 = arith.constant 0 : index
    %c0_6 = arith.constant 0 : index
    %c0_7 = arith.constant 0 : index
    %6 = vector.load %arg3[%c0_5, %c0_6, %c0_7] : memref<1x3x128xf32, #tpu.memory_space<vmem>>, vector<1x3x128xf32>
    %7 = vector.shape_cast %6 : vector<1x3x128xf32> to vector<3x128xf32>
    %8 = vector.extract_strided_slice %7 {offsets = [0, 0], sizes = [1, 128], strides = [1, 1]} : vector<3x128xf32> to vector<1x128xf32>
    %9 = vector.extract_strided_slice %7 {offsets = [1, 0], sizes = [1, 128], strides = [1, 1]} : vector<3x128xf32> to vector<1x128xf32>
    %10 = vector.extract_strided_slice %7 {offsets = [2, 0], sizes = [1, 128], strides = [1, 1]} : vector<3x128xf32> to vector<1x128xf32>
    %11 = arith.truncf %3 : vector<16x128xf32> to vector<16x128xbf16>
    %cst = arith.constant dense<0.000000e+00> : vector<16x128xf32>
    %12 = tpu.matmul %11, %5, %cst {dimension_numbers = #tpu.dot_dimension_numbers<[1], [0], [0], [1], [0, 0, 1, 1], [], []>} : vector<16x128xbf16>, vector<128x128xbf16>, vector<16x128xf32> -> vector<16x128xf32>
    %13 = vector.broadcast %8 : vector<1x128xf32> to vector<16x128xf32>
    %14 = arith.addf %12, %13 : vector<16x128xf32>
    %15 = math.absf %14 : vector<16x128xf32>
    %cst_8 = arith.constant 0.000000e+00 : f32
    %16 = vector.broadcast %cst_8 : f32 to vector<16x128xf32>
    %17 = arith.subf %16, %15 : vector<16x128xf32>
    %18 = math.exp %17 : vector<16x128xf32>
    %19 = math.log1p %18 : vector<16x128xf32>
    %cst_9 = arith.constant 0.000000e+00 : f32
    %20 = vector.broadcast %cst_9 : f32 to vector<16x128xf32>
    %21 = arith.maximumf %14, %20 : vector<16x128xf32>
    %22 = arith.addf %19, %21 : vector<16x128xf32>
    %23 = tpu.iota {dimensions = array<i32: 0>} : vector<16x128xi32>
    %c8_i32 = arith.constant 8 : i32
    %24 = vector.broadcast %c8_i32 : i32 to vector<16x128xi32>
    %25 = arith.cmpi slt, %23, %24 : vector<16x128xi32>
    %cst_10 = arith.constant 0.000000e+00 : f32
    %26 = vector.broadcast %cst_10 : f32 to vector<16x128xf32>
    %27 = arith.select %25, %22, %26 : vector<16x128xi1>, vector<16x128xf32>
    %cst_11 = arith.constant dense<0.000000e+00> : vector<128xf32>
    %28 = vector.multi_reduction <add>, %27, %cst_11 [0] : vector<16x128xf32> to vector<128xf32>
    %29 = vector.shape_cast %28 : vector<128xf32> to vector<1x128xf32>
    %cst_12 = arith.constant 1.250000e-01 : f32
    %30 = vector.broadcast %cst_12 : f32 to vector<1x128xf32>
    %31 = arith.mulf %29, %30 : vector<1x128xf32>
    %32 = arith.mulf %27, %27 : vector<16x128xf32>
    %cst_13 = arith.constant dense<0.000000e+00> : vector<128xf32>
    %33 = vector.multi_reduction <add>, %32, %cst_13 [0] : vector<16x128xf32> to vector<128xf32>
    %34 = vector.shape_cast %33 : vector<128xf32> to vector<1x128xf32>
    %cst_14 = arith.constant 1.250000e-01 : f32
    %35 = vector.broadcast %cst_14 : f32 to vector<1x128xf32>
    %36 = arith.mulf %34, %35 : vector<1x128xf32>
    %37 = arith.mulf %31, %31 : vector<1x128xf32>
    %38 = arith.subf %36, %37 : vector<1x128xf32>
    %cst_15 = arith.constant 0.000000e+00 : f32
    %39 = vector.broadcast %cst_15 : f32 to vector<1x128xf32>
    %40 = arith.maximumf %38, %39 : vector<1x128xf32>
    %41 = vector.broadcast %31 : vector<1x128xf32> to vector<16x128xf32>
    %42 = arith.subf %22, %41 : vector<16x128xf32>
    %43 = vector.broadcast %9 : vector<1x128xf32> to vector<16x128xf32>
    %44 = arith.mulf %43, %42 : vector<16x128xf32>
    %cst_16 = arith.constant 9.99999974E-6 : f32
    %45 = vector.broadcast %cst_16 : f32 to vector<1x128xf32>
    %46 = arith.addf %40, %45 : vector<1x128xf32>
    %47 = math.rsqrt %46 : vector<1x128xf32>
    %48 = vector.broadcast %47 : vector<1x128xf32> to vector<16x128xf32>
    %49 = arith.mulf %44, %48 : vector<16x128xf32>
    %50 = vector.broadcast %10 : vector<1x128xf32> to vector<16x128xf32>
    %51 = arith.addf %49, %50 : vector<16x128xf32>
    %c0_17 = arith.constant 0 : index
    %c0_18 = arith.constant 0 : index
    %52 = vector.load %arg4[%c0_17, %c0_18] : memref<16x128xf32, #tpu.memory_space<vmem>>, vector<16x128xf32>
    tpu.vector_store %arg4[%c0_17, %c0_18], %51 {strides = array<i32>} : memref<16x128xf32, #tpu.memory_space<vmem>>, vector<16x128xf32>,
    return
  }
  func.func @transform_1(%arg0: i32) -> (i32, i32, i32) {
    %c0_i32 = arith.constant 0 : i32
    %c0_i32_0 = arith.constant 0 : i32
    %c0_i32_1 = arith.constant 0 : i32
    return %arg0, %c0_i32, %c0_i32_0 : i32, i32, i32
  }
  func.func @transform_2(%arg0: i32) -> (i32, i32, i32) {
    %c0_i32 = arith.constant 0 : i32
    %c0_i32_0 = arith.constant 0 : i32
    %c0_i32_1 = arith.constant 0 : i32
    return %arg0, %c0_i32, %c0_i32_0 : i32, i32, i32
  }
  func.func @transform_3(%arg0: i32) -> (i32, i32) {
    %c0_i32 = arith.constant 0 : i32
    %c0_i32_0 = arith.constant 0 : i32
    %c0_i32_1 = arith.constant 0 : i32
    return %c0_i32, %c0_i32_0 : i32, i32
  }
}

</mosaic_0001>

<llo_original>
// kernel: _fused_forward.1
$region0: #{_fused_forward.1}
  #allocation0 [shape = 'u32[]', space=smem, size = 0x4, offset = 0x4, fixed_abs, tag = 'smem constant byte address 0x4 - core index']
  #allocation1 [shape = 'u32[144,128]{1,0:T(1,128)}', space=vmem, size = 0x12000, scoped, tag = 'internal scratch']
  #allocation2 [shape = 's32[1]{0}', space=sflag, size = 0x4, scoped, tag = 'scratch operand']
  #allocation7 [shape = 's32[]', space=sflag, size = 0x4, offset = 0, fixed_abs, tag = 'sflag constant byte address 0x0 - dummy sync flag']
  #allocation8 [shape = 's32[]', space=sflag, size = 0x4, offset = 0, fixed_abs, tag = 'sflag constant byte address 0x0 - dummy sync flag']
  #allocation9 [shape = 'u32[]', space=smem, size = 0x4, offset = 0x44, fixed_abs, tag = 'smem constant byte address 0x44 - assertion arg 0']
  #allocation10 [shape = 'u32[]', space=smem, size = 0x4, offset = 0x48, fixed_abs, tag = 'smem constant byte address 0x48 - assertion arg 1']
  %s0 = inlined_call_operand.hbm [shape: f32[16,128], index: 0, kind: input, shape index: {}]
  %s1 = inlined_call_operand.hbm [shape: bf16[2,128,128], index: 1, kind: input, shape index: {}]
  %s2 = inlined_call_operand.vmem [shape: f32[2,3,128], index: 2, kind: input, shape index: {}]
  %s3 = inlined_call_operand.hbm [shape: f32[16,128], index: 3, kind: output, shape index: {}]
  %s4 = sld [smem:[#allocation0]]
  $region53: #{_fused_forward.1} parent=0
    _
  %s6 = ssub.s32 1, %s4
  %s7 = scalar_select 0, %s6, %s4
  $region1: #{_fused_forward.1} parent=0
    #allocation3 [shape = 'u8[65536]{0}', space=vmem, size = 0x10000, scoped, tag = 'input window, operand 1']
    #allocation4 [shape = 's32[2]{0}', space=sflag, size = 0x8, scoped, tag = 'scoped memory for _fused_forward.1']
    #allocation5 [shape = 's32[2]{0}', space=sflag, size = 0x8, scoped, tag = 'scoped memory for _fused_forward.1']
    #allocation6 [shape = 'u8[8192]{0}', space=vmem, size = 0x2000, scoped, tag = 'output window, operand 0, single buffered']
    %8 = vsyncpa [#allocation4], 0
    %s9 = scalar_lea.sflag [#allocation4], 1
    %10 = vsyncpa %s9, 0
    %11 = vsyncpa [#allocation5], 0
    loop: start=0, step=1, limit=4
    $region2: #{_fused_forward.1} parent=1 // loop_pre_header
      _
    $region3: #{_fused_forward.1} parent=1 // loop_header
      %s13 = sphi 0, %s17
      %p14 = scmp.ge.s32.totalorder %s13, 4
      %s23 = sphi 0, %s25
      %s26 = sphi 0, %s23
      %s27 = sphi 0, %s26
      %s43 = sphi 0, %s27
      %s49 = sphi 0, %s51
      %s52 = sphi 0, %s49
      %s53 = sphi 0, %s52
      %s69 = sphi 0, %s53
      %s73 = sphi 0, %s73
      %s75 = sphi 0, %s73
      %s76 = sphi 0, %s75
      %s90 = sphi 0, %s76
    $region4: #{_fused_forward.1} parent=1 // loop_header_branch
      %16 = sbr.rel (%p14) target = $region8
    $region5: #{_fused_forward.1} parent=1 // loop_body
      %s18 = ssub.s32 %s13, 1
      %s19 = ssub.s32 %s13, 2
      %s20 = sadd.s32 %s13, 1
      %s21 = ssub.s32 %s13, %s20
      %p22 = scmp.eq.s32.totalorder %s21, 0
      %s24 = sadd.s32 %s23, 1
      %s25 = scalar_select %p22, %s23, %s24
      %p28 = pneg %p22
      %p29 = scmp.eq.s32.totalorder %s13, 1
      %p30 = por %p28, %p29
      %p31 = scmp.ne.s32.totalorder %s23, %s26
      %p32 = scmp.eq.s32.totalorder %s13, 0
      %p33 = por %p31, %p32
      %p34 = scmp.ne.s32.totalorder %s23, %s26
      %p35 = scmp.eq.s32.totalorder %s18, 1
      %p36 = por %p34, %p35
      %p37 = scmp.ne.s32.totalorder %s26, %s27
      %p38 = scmp.eq.s32.totalorder %s18, 0
      %p39 = por %p37, %p38
      %p40 = scmp.ne.s32.totalorder %s26, %s27
      %p41 = scmp.eq.s32.totalorder %s19, 1
      %p42 = por %p40, %p41
      %p44 = scmp.ne.s32.totalorder %s27, %s43
      %p45 = scmp.eq.s32.totalorder %s19, 0
      %p46 = por %p44, %p45
      %s47 = ssub.s32 %s13, %s20
      %p48 = scmp.eq.s32.totalorder %s47, 0
      %s50 = sadd.s32 %s49, 1
      %s51 = scalar_select %p48, %s49, %s50
      %p54 = pneg %p48
      %p55 = scmp.eq.s32.totalorder %s13, 1
      %p56 = por %p54, %p55
      %p57 = scmp.ne.s32.totalorder %s49, %s52
      %p58 = scmp.eq.s32.totalorder %s13, 0
      %p59 = por %p57, %p58
      %p60 = scmp.ne.s32.totalorder %s49, %s52
      %p61 = scmp.eq.s32.totalorder %s18, 1
      %p62 = por %p60, %p61
      %p63 = scmp.ne.s32.totalorder %s52, %s53
      %p64 = scmp.eq.s32.totalorder %s18, 0
      %p65 = por %p63, %p64
      %p66 = scmp.ne.s32.totalorder %s52, %s53
      %p67 = scmp.eq.s32.totalorder %s19, 1
      %p68 = por %p66, %p67
      %p70 = scmp.ne.s32.totalorder %s53, %s69
      %p71 = scmp.eq.s32.totalorder %s19, 0
      %p72 = por %p70, %p71
      %s74 = sadd.s32 %s73, 1
      %p77 = scmp.eq.s32.totalorder %s13, 1
      %p78 = scmp.ne.s32.totalorder %s73, %s75
      %p79 = scmp.eq.s32.totalorder %s13, 0
      %p80 = por %p78, %p79
      %p81 = scmp.ne.s32.totalorder %s73, %s75
      %p82 = scmp.eq.s32.totalorder %s18, 1
      %p83 = por %p81, %p82
      %p84 = scmp.ne.s32.totalorder %s75, %s76
      %p85 = scmp.eq.s32.totalorder %s18, 0
      %p86 = por %p84, %p85
      %p87 = scmp.ne.s32.totalorder %s75, %s76
      %p88 = scmp.eq.s32.totalorder %s19, 1
      %p89 = por %p87, %p88
      %p91 = scmp.ne.s32.totalorder %s76, %s90
      %p92 = scmp.eq.s32.totalorder %s19, 0
      %p93 = por %p91, %p92
      %p94 = scmp.le.s32.totalorder 1, %s13
      %p95 = scmp.lt.s32.totalorder %s13, 3
      %p96 = pnand %p94, %p95
      %p97 = pneg %p96
      // Predicated region
      $region9: #{_fused_forward.1} parent=5 // pred_check
        _
      $region10: #{_fused_forward.1} parent=5 // pred_check_branch
        %99 = sbr.rel (%p96) target = $region12
      $region11: #{_fused_forward.1} parent=5 // pred_region
        %s100 = ssub.s32 %s13, 1
      $region12: #{_fused_forward.1} parent=5 // pred_fallthru
        _
      %p101 = scmp.lt.s32.totalorder %s13, 2
      // Predicated region
      $region13: #{_fused_forward.1} parent=5 // pred_check
        %p102 = pneg %p101
      $region14: #{_fused_forward.1} parent=5 // pred_check_branch
        %104 = sbr.rel (%p102) target = $region16
      $region15: #{_fused_forward.1} parent=5 // pred_region
        // Predicated region
        $region17: #{_fused_forward.1} parent=15 // pred_check
          %p105 = pneg %p33
        $region18: #{_fused_forward.1} parent=15 // pred_check_branch
          %107 = sbr.rel (%p105) target = $region20
        $region19: #{_fused_forward.1} parent=15 // pred_region
          %s108 = sand.u32 %s23, 1
          %s109 = scalar_lea.sflag [#allocation4], %s108
          %s110 = sand.u32 %s23, 1
          %s111 = smul.addr %s110, 64
          %s112 = scalar_lea.vmem [#allocation3], %s111
          %s114 = ssub.s32 1024, 1024
          %115 = vsyncadd %s109, %s114
          %s116 = smul.addr %s13, 16
          %s117 = smul.addr %s116, 64
          %s118 = scalar_lea.hbm %s1, %s117
          %s119 = sshll.u32 %s112, 4
          %s120 = int_to_ptr.vmem [resolvable:$true] %s119
          %125 = dma.hbm_to_vmem [thread:$0]  %s118, 1024, %s120, %s109, 64, 64, 4
        $region20: #{_fused_forward.1} parent=15 // pred_fallthru
          _
        // Predicated region
        $region21: #{_fused_forward.1} parent=15 // pred_check
          %p126 = pneg %p59
        $region22: #{_fused_forward.1} parent=15 // pred_check_branch
          %128 = sbr.rel (%p126) target = $region24
        $region23: #{_fused_forward.1} parent=15 // pred_region
          %p129 = scmp.lt.s32.totalorder %s13, 1
          %s130 = scalar_select %p129, %s13, 1
          %s131 = smul.addr %s130, 4
          %s132 = scalar_lea.vmem %s2, %s131
        $region24: #{_fused_forward.1} parent=15 // pred_fallthru
          _
      $region16: #{_fused_forward.1} parent=5 // pred_fallthru
        _
      %p133 = scmp.le.s32.totalorder 1, %s13
      %p134 = scmp.lt.s32.totalorder %s13, 3
      %p135 = pnand %p133, %p134
      %p136 = pneg %p135
      // Predicated region
      $region25: #{_fused_forward.1} parent=5 // pred_check
        _
      $region26: #{_fused_forward.1} parent=5 // pred_check_branch
        %138 = sbr.rel (%p135) target = $region28
      $region27: #{_fused_forward.1} parent=5 // pred_region
        %s139 = ssub.s32 %s13, 1
        %s140 = sand.u32 %s26, 1
        %s141 = scalar_lea.sflag [#allocation4], %s140
        %s142 = sand.u32 %s26, 1
        %s143 = smul.addr %s142, 64
        %s144 = scalar_lea.vmem [#allocation3], %s143
        // Predicated region
        $region29: #{_fused_forward.1} parent=27 // pred_check
          %p145 = pneg %p39
        $region30: #{_fused_forward.1} parent=27 // pred_check_branch
          %147 = sbr.rel (%p145) target = $region32
        $region31: #{_fused_forward.1} parent=27 // pred_region
          %148 = dma.done %s141, 1024
        $region32: #{_fused_forward.1} parent=27 // pred_fallthru
          _
        %s149 = sand.u32 %s26, 1
        %s150 = scalar_lea.sflag [#allocation4], %s149
        %s151 = sand.u32 %s26, 1
        %s152 = smul.addr %s151, 64
        %s153 = scalar_lea.vmem [#allocation3], %s152
        %p154 = pneg %p39
        %p155 = pneg %p36
        %p156 = scmp.lt.s32.totalorder %s18, 1
        %s157 = scalar_select %p156, %s18, 1
        %s158 = smul.addr %s157, 4
        %s159 = scalar_lea.vmem %s2, %s158
        %p160 = pneg %p65
        %p161 = pneg %p62
        %p162 = pneg %p86
        %p163 = pneg %p83
        %p164 = scmp.lt.s32.totalorder %s18, 1
        %s165 = scalar_select %p164, %s18, 1
        %s166 = smul.addr %s165, 4
        %s167 = scalar_lea.vmem %s2, %s166
        %p169 = scmp.eq.s32.totalorder %s18, 0
        // Predicated region
        $region33: #{_fused_forward.1} parent=27 // pred_check
          %p170 = pneg %p169
        $region34: #{_fused_forward.1} parent=27 // pred_check_branch
          %172 = sbr.rel (%p170) target = $region36
        $region35: #{_fused_forward.1} parent=27 // pred_region
          // Predicated region
          $region37: #{_fused_forward.1} parent=35 // pred_check
            _
          $region38: #{_fused_forward.1} parent=35 // pred_check_branch
            %174 = sbr.rel target = $region40
          $region39: #{_fused_forward.1} parent=35 // pred_region
            %175 = sst [smem:[#allocation9]] [#allocation8]
            %176 = sst [smem:[#allocation10]] [#allocation7]
          $region40: #{_fused_forward.1} parent=35 // pred_fallthru
            _
          %178 = shalt.err (0)
          %s180 = sshll.u32 [#allocation6], 4
          %s181 = int_to_ptr.vmem [resolvable:$true] %s180
          %183 = dma.hbm_to_vmem [thread:$0]  %s0, 256, %s181, [#allocation2]
          %s184 = smul.u32 16, 1
          %s185 = sshll.u32 %s184, 4
          %186 = dma.done [#allocation2], %s185
        $region36: #{_fused_forward.1} parent=27 // pred_fallthru
          _
        %v187 = vld [vmem:[#allocation6] sm:$0xff]
        %v188 = vld [vmem:[#allocation6 + $0x8] sm:$0xff]
        %v189 = vld [vmem:[%s144] sm:$0xf]
        %v190 = vld [vmem:[%s144 + $0x4] sm:$0xf]
        %v191 = vld [vmem:[%s144 + $0x8] sm:$0xf]
        %v192 = vld [vmem:[%s144 + $0xc] sm:$0xf]
        %v193 = vld [vmem:[%s144 + $0x10] sm:$0xf]
        %v194 = vld [vmem:[%s144 + $0x14] sm:$0xf]
        %v195 = vld [vmem:[%s144 + $0x18] sm:$0xf]
        %v196 = vld [vmem:[%s144 + $0x1c] sm:$0xf]
        %v197 = vld [vmem:[%s144 + $0x20] sm:$0xf]
        %v198 = vld [vmem:[%s144 + $0x24] sm:$0xf]
        %v199 = vld [vmem:[%s144 + $0x28] sm:$0xf]
        %v200 = vld [vmem:[%s144 + $0x2c] sm:$0xf]
        %v201 = vld [vmem:[%s144 + $0x30] sm:$0xf]
        %v202 = vld [vmem:[%s144 + $0x34] sm:$0xf]
        %v203 = vld [vmem:[%s144 + $0x38] sm:$0xf]
        %v204 = vld [vmem:[%s144 + $0x3c] sm:$0xf]
        %v205 = vld [vmem:[%s167] sm:$0x7]
        %v206 = vpack.c.bf16 %v188, %v187
        %v207 = vlaneseq
        %v208 = vshrl.u32 %v207, 7
        %v209 = vsub.s32 0, %v208
        %v210 = vrot.slane %v205, %v209
        %v227 = vunpack.c.l.b16 %v189
        %v228 = vunpack.c.l.b16 %v190
        %v229 = vunpack.c.l.b16 %v191
        %v230 = vunpack.c.l.b16 %v192
        %v231 = vunpack.c.l.b16 %v193
        %v232 = vunpack.c.l.b16 %v194
        %v233 = vunpack.c.l.b16 %v195
        %v234 = vunpack.c.l.b16 %v196
        %v235 = vunpack.c.l.b16 %v197
        %v236 = vunpack.c.l.b16 %v198
        %v237 = vunpack.c.l.b16 %v199
        %v238 = vunpack.c.l.b16 %v200
        %v239 = vunpack.c.l.b16 %v201
        %v240 = vunpack.c.l.b16 %v202
        %v241 = vunpack.c.l.b16 %v203
        %v242 = vunpack.c.l.b16 %v204
        %v243 = vpack.c.b16 %v228, %v227
        %v244 = vpack.c.b16 %v230, %v229
        %v245 = vpack.c.b16 %v232, %v231
        %v246 = vpack.c.b16 %v234, %v233
        %v247 = vpack.c.b16 %v236, %v235
        %v248 = vpack.c.b16 %v238, %v237
        %v249 = vpack.c.b16 %v240, %v239
        %v250 = vpack.c.b16 %v242, %v241
        %259 = vmatprep.subr.bf16.mxu0 0
        %260 = vmatpush1.bf16.msra.mxu0 %v243
        %261 = vmatprep.subr.bf16.mxu0 0
        %262 = vmatpush1.bf16.msra.mxu0 %v244
        %263 = vmatprep.subr.bf16.mxu0 0
        %264 = vmatpush1.bf16.msra.mxu0 %v245
        %265 = vmatprep.subr.bf16.mxu0 0
        %266 = vmatpush1.bf16.msra.mxu0 %v246
        %267 = vmatprep.subr.bf16.mxu0 0
        %268 = vmatpush1.bf16.msra.mxu0 %v247
        %269 = vmatprep.subr.bf16.mxu0 0
        %270 = vmatpush1.bf16.msra.mxu0 %v248
        %271 = vmatprep.subr.bf16.mxu0 0
        %272 = vmatpush1.bf16.msra.mxu0 %v249
        %273 = vmatprep.subr.bf16.mxu0 0
        %274 = vmatpush1.bf16.msra.mxu0 %v250
        %275 = vmatprep.subr.bf16.mxu0 0
        %276 = vmatpush1.bf16.msra.mxu0 0
        %277 = vmatprep.subr.bf16.mxu0 0
        %278 = vmatpush1.bf16.msra.mxu0 0
        %279 = vmatprep.subr.bf16.mxu0 0
        %280 = vmatpush1.bf16.msra.mxu0 0
        %281 = vmatprep.subr.bf16.mxu0 0
        %282 = vmatpush1.bf16.msra.mxu0 0
        %283 = vmatprep.subr.bf16.mxu0 0
        %284 = vmatpush1.bf16.msra.mxu0 0
        %285 = vmatprep.subr.bf16.mxu0 0
        %286 = vmatpush1.bf16.msra.mxu0 0
        %287 = vmatprep.subr.bf16.mxu0 0
        %288 = vmatpush1.bf16.msra.mxu0 0
        %289 = vmatprep.subr.bf16.mxu0 0
        %290 = vmatpush1.bf16.msra.mxu0 0
        %291 = vmatprep.mubr.bf16.mxu0 0
        %292 = vmatmul.mubr.bf16.gmra.mrb[0].mxu0 %v206
        %v293 = vpop.f32.mrb[0].mxu0
        %v294 = vadd.f32 %v210, %v293
        %v295 = vpop.f32.mrb[0].mxu0
        %v296 = vpop.f32.mrb[0].mxu0
        %v297 = vadd.f32 %v210, %v296
        %v298 = vpop.f32.mrb[0].mxu0
        %299 = vdwg.mxu0
        %v300 = vand.u32 2147483647, %v294
        %v301 = vand.u32 2147483647, %v297
        %v302 = vsub.f32 0.0, %v300
        %v303 = vsub.f32 0.0, %v301
        %v304 = vmul.f32 %v302, 1.442695
        %v305 = vpow.pop %v304
        %v306 = vmul.f32 %v303, 1.442695
        %v307 = vpow.pop %v306
        %v308 = vadd.f32 %v305, 1.0
        %v309 = vlog2.pop %v308
        %v310 = vmul.f32 %v309, 0.6931472
        %v311 = vmul.f32 -0.5, %v305
        %v312 = vadd.f32 %v311, 1.0
        %v313 = vmul.f32 %v312, %v305
        %v314 = vand.u32 2147483647, %v305
        %vm315 = vcmp.lt.f32.partialorder %v314, 0.0004427343
        %v316 = vsel %vm315, %v313, %v310
        %v317 = vadd.f32 %v307, 1.0
        %v318 = vlog2.pop %v317
        %v319 = vmul.f32 %v318, 0.6931472
        %v320 = vmul.f32 -0.5, %v307
        %v321 = vadd.f32 %v320, 1.0
        %v322 = vmul.f32 %v321, %v307
        %v323 = vand.u32 2147483647, %v307
        %vm324 = vcmp.lt.f32.partialorder %v323, 0.0004427343
        %v325 = vsel %vm324, %v322, %v319
        %v326 = vmax.f32 %v294, 0.0
        %v327 = vmax.f32 %v297, 0.0
        %v328 = vadd.f32 %v316, %v326
        %v329 = vadd.f32 %v325, %v327
        %v330 = vlaneseq
        %v331 = vshrl.u32 %v330, 7
        %v332 = vadd.s32 %v331, 8
        %vm333 = vcmp.lt.s32.totalorder %v331, 8
        %vm334 = vcmp.lt.s32.totalorder %v332, 8
        %v335 = vsel %vm333, %v328, 0.0
        %v336 = vsel %vm334, %v329, 0.0
        %v337 = vadd.f32 %v335, %v336
        %v338 = vrot.slane %v337, 4
        %v339 = vadd.f32 %v337, %v338
        %v340 = vrot.slane %v339, 2
        %v341 = vadd.f32 %v339, %v340
        %v342 = vrot.slane %v341, 1
        %v343 = vadd.f32 %v341, %v342
        %v344 = vmul.f32 %v343, 0.125
        %v345 = vmul.f32 %v335, %v335
        %v346 = vmul.f32 %v336, %v336
        %v347 = vadd.f32 %v345, %v346
        %v348 = vrot.slane %v347, 4
        %v349 = vadd.f32 %v347, %v348
        %v350 = vrot.slane %v349, 2
        %v351 = vadd.f32 %v349, %v350
        %v352 = vrot.slane %v351, 1
        %v353 = vadd.f32 %v351, %v352
        %v354 = vmul.f32 %v353, 0.125
        %v355 = vmul.f32 %v344, %v344
        %v356 = vsub.f32 %v354, %v355
        %v357 = vmax.f32 %v356, 0.0
        %v358 = vsub.f32 %v328, %v344
        %v359 = vsub.f32 %v329, %v344
        %v360 = vlaneseq
        %v361 = vshrl.u32 %v360, 7
        %v362 = vsub.s32 1, %v361
        %v363 = vrot.slane %v205, %v362
        %v364 = vmul.f32 %v363, %v358
        %v365 = vmul.f32 %v363, %v359
        %v366 = vadd.f32 %v357, 1e-05
        %v367 = vrsqrt.pop %v366
        %v368 = vmul.f32 %v364, %v367
        %v369 = vmul.f32 %v365, %v367
        %v370 = vlaneseq
        %v371 = vshrl.u32 %v370, 7
        %v372 = vsub.s32 2, %v371
        %v373 = vrot.slane %v205, %v372
        %v374 = vadd.f32 %v368, %v373
        %v375 = vadd.f32 %v369, %v373
        %376 = vst [vmem:[#allocation6] sm:$0xff] %v374
        %377 = vst [vmem:[#allocation6 + $0x8] sm:$0xff] %v375
        // Predicated region
        $region41: #{_fused_forward.1} parent=27 // pred_check
          %p378 = pneg %p83
        $region42: #{_fused_forward.1} parent=27 // pred_check_branch
          %380 = sbr.rel (%p378) target = $region44
        $region43: #{_fused_forward.1} parent=27 // pred_region
          %s382 = ssub.s32 256, 256
          %383 = vsyncadd [#allocation5], %s382
          %s384 = sshll.u32 [#allocation6], 4
          %s385 = int_to_ptr.vmem [resolvable:$true] %s384
          %390 = dma.vmem_to_hbm [thread:$0]  %s385, 256, %s3, [#allocation5], 128, 128, 8
        $region44: #{_fused_forward.1} parent=27 // pred_fallthru
          _
        // Predicated region
        $region45: #{_fused_forward.1} parent=27 // pred_check
          %p391 = pneg %p83
        $region46: #{_fused_forward.1} parent=27 // pred_check_branch
          %393 = sbr.rel (%p391) target = $region48
        $region47: #{_fused_forward.1} parent=27 // pred_region
          %394 = dma.done [#allocation5], 256
        $region48: #{_fused_forward.1} parent=27 // pred_fallthru
          _
      $region28: #{_fused_forward.1} parent=5 // pred_fallthru
        _
      %p395 = scmp.le.s32.totalorder 2, %s13
      // Predicated region
      $region49: #{_fused_forward.1} parent=5 // pred_check
        %p396 = pneg %p395
      $region50: #{_fused_forward.1} parent=5 // pred_check_branch
        %398 = sbr.rel (%p396) target = $region52
      $region51: #{_fused_forward.1} parent=5 // pred_region
        %s399 = ssub.s32 %s13, 2
      $region52: #{_fused_forward.1} parent=5 // pred_fallthru
        _
    $region6: #{_fused_forward.1} parent=1 // loop_footer
      %s17 = sadd.s32 1, %s13
    $region7: #{_fused_forward.1} parent=1 // loop_footer_branch
      %12 = sbr.rel target = $region3
    $region8: #{_fused_forward.1} parent=1 // loop_exit
      _
    %400 = vsyncpa [#allocation4], 1
    %s401 = scalar_lea.sflag [#allocation4], 1
    %402 = vsyncpa %s401, 1
    %403 = vsyncpa [#allocation5], 1
    %s404 = scalar_lea.sflag [#allocation5], 1
    %405 = vsyncpa %s404, 1
  %406 = vsyncmov [#allocation2]
  %s407 = vpop.sfrf %406
  %p408 = scmp.eq.s32.totalorder %s407, 0
  %p409 = pneg %p408
  %411 = shalt.err (%p409)

</llo_original>
